<compile_context>
chip_gen: v7x
topology: tpu7x:2x2x1
jax: 0.10.0
libtpu: 0.0.40
codegen_flags: <defaults>
</compile_context>

<pallas_src>
import functools

import jax
import jax.numpy as jnp
from jax.experimental import pallas as pl
from jax.experimental.pallas import tpu as pltpu


def _pe_kernel(x_ref, emb_ref, o_ref, *, p, use_dropout, seed, N, TB, TN):
    # (TB, TN) + (1, TN) broadcast add of the positional embedding.
    y = x_ref[...] + emb_ref[...]

    if use_dropout:
        bi = pl.program_id(0)
        bj = pl.program_id(1)
        # Global element index of every entry in this tile.
        row = (jax.lax.broadcasted_iota(jnp.uint32, (TB, TN), 0)
               + (bi * TB).astype(jnp.uint32))
        col = (jax.lax.broadcasted_iota(jnp.uint32, (TB, TN), 1)
               + (bj * TN).astype(jnp.uint32))
        h = row * jnp.uint32(N) + col
        # Mix in the seed, then murmur3 fmix32 finalizer (pure 32-bit VPU ops).
        h = h + jnp.uint32(seed & 0xFFFFFFFF) * jnp.uint32(0x9E3779B9)
        h = h ^ (h >> jnp.uint32(16))
        h = h * jnp.uint32(0x85EBCA6B)
        h = h ^ (h >> jnp.uint32(13))
        h = h * jnp.uint32(0xC2B2AE35)
        h = h ^ (h >> jnp.uint32(16))
        # Integer-threshold compare: P(keep) = 1 - p (no u32->f32 convert).
        thresh = jnp.uint32(min(int(round(p * 2.0 ** 32)), 2 ** 32 - 1))
        keep = h >= thresh
        scale = jnp.asarray(1.0 / (1.0 - p), dtype=y.dtype)
        y = jnp.where(keep, y * scale, jnp.zeros_like(y))

    o_ref[...] = y.astype(o_ref.dtype)


def _pick_tiles(B, N, bytes_per_el, max_tile_bytes=1 << 21):
    """Block dims: sublane dim multiple of 8 (or full B), lane dim multiple of
    128 (or full N), tile capped at ~2 MiB (safe for v7x's 64 MiB VMEM with
    double buffering + dropout temporaries)."""
    if B % 8 == 0:
        tb = 8
        while tb * 2 <= 64 and tb * 2 <= B and B % (tb * 2) == 0:
            tb *= 2
    else:
        tb = B  # full dim is always a legal block extent
    if N % 128 == 0:
        max_tn = max(128, (max_tile_bytes // (tb * bytes_per_el)) // 128 * 128)
        tn = min(N, max_tn)
        while N % tn != 0:
            tn -= 128
    else:
        tn = N  # full dim fallback (small / odd trailing sizes)
    return tb, tn


def positional_embedding(x, emb, seed, *, dropout_rate=0.5, training=True):
    """x: (B, *input_shape); emb: (1, *input_shape); seed: python int."""
    B = x.shape[0]
    in_shape = tuple(x.shape[1:])
    assert emb.shape == (1,) + in_shape
    N = 1
    for d in in_shape:
        N *= d

    # Lane-dense flattened layout: hidden/spatial dims mapped to the lane axis.
    x2 = x.reshape(B, N)
    e2 = emb.reshape(1, N)

    use_dropout = training and (dropout_rate is not None) and (dropout_rate != 0.0)
    tb, tn = _pick_tiles(B, N, x.dtype.itemsize)

    kernel = functools.partial(
        _pe_kernel,
        p=float(dropout_rate or 0.0),
        use_dropout=use_dropout,
        seed=int(seed),
        N=N,
        TB=tb,
        TN=tn,
    )

    out2 = pl.pallas_call(
        kernel,
        out_shape=jax.ShapeDtypeStruct((B, N), x.dtype),
        grid=(B // tb, N // tn),
        in_specs=[
            pl.BlockSpec((tb, tn), lambda i, j: (i, j)),   # x tile
            pl.BlockSpec((1, tn), lambda i, j: (0, j)),    # emb tile (shared over batch)
        ],
        out_specs=pl.BlockSpec((tb, tn), lambda i, j: (i, j)),
        compiler_params=pltpu.CompilerParams(
            # Stateless per-element RNG -> order independent -> both axes can be
            # sharded across TensorCores on v7x (no-op on single-TC v5e/v6e).
            dimension_semantics=("parallel", "parallel"),
        ),
    )(x2, e2)
    return out2.reshape(x.shape)


if __name__ == "__main__":
    key = jax.random.PRNGKey(0)
    kx, kemb = jax.random.split(key)

    B, S, H = 2, 8, 32          # input_shape = (S, H) = (8, 32); batch = 2
    dropout_rate = 0.5

    x = jax.random.normal(kx, (B, S, H), dtype=jnp.float32)
    # nn.Parameter(torch.zeros(1, *input_shape)) -> shape (1, S, H).
    # Use a deterministic non-zero init so the broadcast add is exercised.
    emb = 0.01 * jax.random.normal(kemb, (1, S, H), dtype=jnp.float32)

    # 1) Eval / no-dropout path: must equal x + emb.
    out_nodrop = positional_embedding(x, emb, 0, dropout_rate=0.0, training=False)
    jax.block_until_ready(out_nodrop)
    assert jnp.allclose(out_nodrop, x + emb, atol=1e-6), "add path mismatch"

    # 2) Training path with dropout: surviving elements equal (x + emb) / (1 - p).
    out = positional_embedding(x, emb, 1234, dropout_rate=dropout_rate, training=True)
    jax.block_until_ready(out)
    assert out.shape == (B, S, H) and out.dtype == jnp.float32
    kept = out != 0.0
    expected = (x + emb) / (1.0 - dropout_rate)
    assert jnp.allclose(jnp.where(kept, out, 0.0),
                        jnp.where(kept, expected, 0.0), atol=1e-5), "dropout scaling mismatch"
    drop_frac = 1.0 - jnp.mean(kept.astype(jnp.float32))
    assert 0.2 < float(drop_frac) < 0.8, "dropout fraction far from p=0.5"

    print("KERNEL_OK")
</pallas_src>

<mosaic_0001>
module attributes {stable_mosaic.version = 11 : i64} {
  func.func @_pe_kernel(%arg0: i32, %arg1: i32, %arg2: memref<2x256xf32, #tpu.memory_space<vmem>>, %arg3: memref<1x256xf32, #tpu.memory_space<vmem>>, %arg4: memref<2x256xf32, #tpu.memory_space<vmem>>) attributes {dimension_semantics = [#tpu.dimension_semantics<parallel>, #tpu.dimension_semantics<parallel>], iteration_bounds = array<i64: 1, 1>, scalar_prefetch = 0 : i64, scratch_operands = 0 : i64, tpu.core_type = #tpu.core_type<tc>, window_params = [{transform_indices = @transform_0, window_bounds = array<i64: 2, 256>}, {transform_indices = @transform_1, window_bounds = array<i64: 1, 256>}, {transform_indices = @transform_2, window_bounds = array<i64: 2, 256>}]} {
    %c0 = arith.constant 0 : index
    %c0_0 = arith.constant 0 : index
    %0 = vector.load %arg2[%c0, %c0_0] : memref<2x256xf32, #tpu.memory_space<vmem>>, vector<2x256xf32>
    %c0_1 = arith.constant 0 : index
    %c0_2 = arith.constant 0 : index
    %1 = vector.load %arg3[%c0_1, %c0_2] : memref<1x256xf32, #tpu.memory_space<vmem>>, vector<1x256xf32>
    %2 = vector.broadcast %1 : vector<1x256xf32> to vector<2x256xf32>
    %3 = arith.addf %0, %2 : vector<2x256xf32>
    %c0_3 = arith.constant 0 : index
    %c0_4 = arith.constant 0 : index
    %4 = vector.load %arg4[%c0_3, %c0_4] : memref<2x256xf32, #tpu.memory_space<vmem>>, vector<2x256xf32>
    tpu.vector_store %arg4[%c0_3, %c0_4], %3 {strides = array<i32>} : memref<2x256xf32, #tpu.memory_space<vmem>>, vector<2x256xf32>,
    return
  }
  func.func @transform_0(%arg0: i32, %arg1: i32) -> (i32, i32) {
    %c0_i32 = arith.constant 0 : i32
    return %arg0, %arg1 : i32, i32
  }
  func.func @transform_1(%arg0: i32, %arg1: i32) -> (i32, i32) {
    %c0_i32 = arith.constant 0 : i32
    %c0_i32_0 = arith.constant 0 : i32
    return %c0_i32, %arg1 : i32, i32
  }
  func.func @transform_2(%arg0: i32, %arg1: i32) -> (i32, i32) {
    %c0_i32 = arith.constant 0 : i32
    return %arg0, %arg1 : i32, i32
  }
}

</mosaic_0001>

<llo_original>
// kernel: tpu_custom_call.1
$region0: #{tpu_custom_call.1}
  #allocation0 [shape = 'u32[]', space=smem, size = 0x4, offset = 0x4, fixed_abs, tag = 'smem constant byte address 0x4 - core index']
  #allocation1 [shape = 'u32[144,128]{1,0:T(1,128)}', space=vmem, size = 0x12000, scoped, tag = 'internal scratch']
  %s0 = inlined_call_operand.hbm [shape: f32[2,256], index: 0, kind: input, shape index: {}]
  %s1 = inlined_call_operand.vmem [shape: f32[1,256], index: 1, kind: input, shape index: {}]
  %s2 = inlined_call_operand.hbm [shape: f32[2,256], index: 2, kind: output, shape index: {}]
  %s3 = sld [smem:[#allocation0]]
  $region22: #{tpu_custom_call.1} parent=0
    _
  %s5 = ssub.s32 1, %s3
  %s6 = scalar_select 0, %s5, %s3
  $region1: #{tpu_custom_call.1} parent=0
    #allocation2 [shape = 'u8[2048]{0}', space=vmem, size = 0x800, scoped, tag = 'input window, operand 0, single buffered']
    #allocation3 [shape = 's32[1]{0}', space=sflag, size = 0x4, scoped, tag = 'scoped memory for tpu_custom_call.1']
    #allocation4 [shape = 's32[1]{0}', space=sflag, size = 0x4, scoped, tag = 'scoped memory for tpu_custom_call.1']
    #allocation5 [shape = 'u8[2048]{0}', space=vmem, size = 0x800, scoped, tag = 'output window, operand 0, single buffered']
    %7 = vsyncpa [#allocation3], 0
    %8 = vsyncpa [#allocation4], 0
    // Predicated region
    $region2: #{tpu_custom_call.1} parent=1 // pred_check
      _
    $region3: #{tpu_custom_call.1} parent=1 // pred_check_branch
      %10 = sbr.rel (0) target = $region5
    $region4: #{tpu_custom_call.1} parent=1 // pred_region
      %s12 = ssub.s32 64, 64
      %13 = vsyncadd [#allocation3], %s12
      %s15 = sshll.u32 [#allocation2], 4
      %s16 = int_to_ptr.vmem [resolvable:$true] %s15
      %18 = dma.hbm_to_vmem [thread:$0]  %s0, 64, %s16, [#allocation3]
    $region5: #{tpu_custom_call.1} parent=1 // pred_fallthru
      _
    // Predicated region
    $region6: #{tpu_custom_call.1} parent=1 // pred_check
      _
    $region7: #{tpu_custom_call.1} parent=1 // pred_check_branch
      %20 = sbr.rel (0) target = $region9
    $region8: #{tpu_custom_call.1} parent=1 // pred_region
      _
    $region9: #{tpu_custom_call.1} parent=1 // pred_fallthru
      _
    // Predicated region
    $region10: #{tpu_custom_call.1} parent=1 // pred_check
      _
    $region11: #{tpu_custom_call.1} parent=1 // pred_check_branch
      %22 = sbr.rel (0) target = $region13
    $region12: #{tpu_custom_call.1} parent=1 // pred_region
      %23 = dma.done [#allocation3], 64
    $region13: #{tpu_custom_call.1} parent=1 // pred_fallthru
      _
    %v24 = vld [vmem:[#allocation2] sm:$0xf]
    %v25 = vld [vmem:[%s1] sm:$0x3]
    %v27 = vlaneseq
    %v28 = vshrl.u32 %v27, 7
    %v29 = vsub.s32 0, %v28
    %v30 = vrot.slane %v25, %v29
    %v31 = vlaneseq
    %v32 = vshrl.u32 %v31, 7
    %v33 = vsub.s32 1, %v32
    %v34 = vrot.slane %v25, %v33
    %v35 = vcombine.low %v30, %v34
    %v37 = vunpack.c.l.s4 1983009808
    %v38 = vunpack.c.0.s8 %v37
    %v39 = vlaneseq
    %v40 = vshrl.u32 %v39, 7
    %v41 = vsub.s32 %v38, %v40
    %v42 = vrot.slane %v35, %v41
    %v44 = vadd.f32 %v24, %v42
    %45 = vst [vmem:[#allocation5] sm:$0xf] %v44
    // Predicated region
    $region14: #{tpu_custom_call.1} parent=1 // pred_check
      _
    $region15: #{tpu_custom_call.1} parent=1 // pred_check_branch
      %47 = sbr.rel (0) target = $region17
    $region16: #{tpu_custom_call.1} parent=1 // pred_region
      %s49 = ssub.s32 64, 64
      %50 = vsyncadd [#allocation4], %s49
      %s52 = sshll.u32 [#allocation5], 4
      %s53 = int_to_ptr.vmem [resolvable:$true] %s52
      %55 = dma.vmem_to_hbm [thread:$0]  %s53, 64, %s2, [#allocation4]
    $region17: #{tpu_custom_call.1} parent=1 // pred_fallthru
      _
    // Predicated region
    $region18: #{tpu_custom_call.1} parent=1 // pred_check
      _
    $region19: #{tpu_custom_call.1} parent=1 // pred_check_branch
      %57 = sbr.rel (0) target = $region21
    $region20: #{tpu_custom_call.1} parent=1 // pred_region
      %58 = dma.done [#allocation4], 64
    $region21: #{tpu_custom_call.1} parent=1 // pred_fallthru
      _
    %59 = vsyncpa [#allocation3], 1
    %60 = vsyncpa [#allocation4], 1

</llo_original>
